<compile_context>
chip_gen: v7x
topology: tpu7x:2x2x1
jax: 0.10.0
libtpu: 0.0.40
codegen_flags: <defaults>
</compile_context>

<pallas_src>
import functools

import jax
import jax.numpy as jnp
from jax.experimental import pallas as pl
from jax.experimental.pallas import tpu as pltpu

IMG_DIM = 28 * 28        # 784
LATENT_DIM = 100
H1 = 128
H2 = 256


def _round_up(x, m):
    return ((x + m - 1) // m) * m


def _choose_tile(B, block_b):
    """Pick (bb, Bp): a batch tile that divides B whenever possible.

    * B <= block_b            -> single full-batch tile (no padding, no slice).
    * B  > block_b            -> largest multiple-of-8 divisor of B that is
                                 <= block_b (no padding, no slice).
    * no such divisor exists  -> pad B up to a multiple of block_b (rare path).
    """
    if B <= block_b:
        return B, B
    block_b8 = max(8, (block_b // 8) * 8)
    for cand in range(block_b8, 7, -8):
        if B % cand == 0:
            return cand, B
    return block_b8, _round_up(B, block_b8)


def _generator_kernel(z_ref, w1_ref, b1_ref, w2_ref, b2_ref, w3_ref, b3_ref, o_ref):
    # Entire fused MLP for one batch tile; all operands resident in VMEM.
    # MXU inputs are cast to the weight dtype (f32 or bf16); accumulation and all
    # elementwise work (bias add / ReLU / tanh) stay in f32.
    wdt = w1_ref.dtype

    z = z_ref[...].astype(wdt)
    h1 = jnp.dot(z, w1_ref[...], preferred_element_type=jnp.float32) + b1_ref[...]
    h1 = jnp.maximum(h1, 0.0)                       # ReLU

    h2 = jnp.dot(h1.astype(wdt), w2_ref[...], preferred_element_type=jnp.float32) + b2_ref[...]
    h2 = jnp.maximum(h2, 0.0)                       # ReLU

    out = jnp.dot(h2.astype(wdt), w3_ref[...], preferred_element_type=jnp.float32) + b3_ref[...]
    o_ref[...] = jnp.tanh(out).astype(o_ref.dtype)  # Tanh (f32), cast only at store


@functools.partial(jax.jit, static_argnames=("block_b", "weights_bf16", "out_dtype"))
def generator_forward(z, w1, b1, w2, b2, w3, b3, *, block_b=512,
                      weights_bf16=False, out_dtype=None):
    B, latent = z.shape
    assert latent == LATENT_DIM
    out_dtype = z.dtype if out_dtype is None else out_dtype

    # Optional bf16 MXU fast path (all generations); accumulation stays f32.
    if weights_bf16:
        w1 = w1.astype(jnp.bfloat16)
        w2 = w2.astype(jnp.bfloat16)
        w3 = w3.astype(jnp.bfloat16)

    bb, Bp = _choose_tile(B, block_b)
    z_in = z if Bp == B else jnp.pad(z, ((0, Bp - B), (0, 0)))
    grid = (Bp // bb,)

    # All feature dims use full-extent blocks (trivially satisfies the (8,128)
    # rule); the output block is lane-dense at the true 784 width (no padding).
    in_specs = [
        pl.BlockSpec((bb, LATENT_DIM), lambda i: (i, 0)),   # z tile (K=100, padded in VMEM by Mosaic)
        pl.BlockSpec((LATENT_DIM, H1), lambda i: (0, 0)),   # W1
        pl.BlockSpec((1, H1), lambda i: (0, 0)),            # b1
        pl.BlockSpec((H1, H2), lambda i: (0, 0)),           # W2
        pl.BlockSpec((1, H2), lambda i: (0, 0)),            # b2
        pl.BlockSpec((H2, IMG_DIM), lambda i: (0, 0)),      # W3
        pl.BlockSpec((1, IMG_DIM), lambda i: (0, 0)),       # b3
    ]
    out_spec = pl.BlockSpec((bb, IMG_DIM), lambda i: (i, 0))

    out = pl.pallas_call(
        _generator_kernel,
        out_shape=jax.ShapeDtypeStruct((Bp, IMG_DIM), out_dtype),
        grid_spec=pltpu.PrefetchScalarGridSpec(
            num_scalar_prefetch=0,
            grid=grid,
            in_specs=in_specs,
            out_specs=out_spec,
        ),
        compiler_params=pltpu.CompilerParams(
            dimension_semantics=("parallel",),
        ),
    )(z_in, w1, b1, w2, b2, w3, b3)

    # No feature slicing needed anymore; batch slice only when padding was used.
    return out if Bp == B else out[:B]


def init_generator_params(key):
    """PyTorch-Linear-style init (U[-1/sqrt(fan_in), 1/sqrt(fan_in)]).

    Weights are (in_features, out_features), i.e. transposed vs. torch's (out, in)
    storage, to match the kernel's y = x @ W + b convention.
    """
    def linear(key, fan_in, fan_out):
        kw, kb = jax.random.split(key)
        bound = 1.0 / jnp.sqrt(fan_in)
        w = jax.random.uniform(kw, (fan_in, fan_out), jnp.float32, -bound, bound)
        b = jax.random.uniform(kb, (1, fan_out), jnp.float32, -bound, bound)
        return w, b

    k1, k2, k3 = jax.random.split(key, 3)
    w1, b1 = linear(k1, LATENT_DIM, H1)
    w2, b2 = linear(k2, H1, H2)
    w3, b3 = linear(k3, H2, IMG_DIM)
    return w1, b1, w2, b2, w3, b3


def generator_reference(z, w1, b1, w2, b2, w3, b3):
    """Pure-JAX reference of the same forward pass (for correctness checks)."""
    h1 = jnp.maximum(z @ w1 + b1, 0.0)
    h2 = jnp.maximum(h1 @ w2 + b2, 0.0)
    return jnp.tanh(h2 @ w3 + b3)


if __name__ == "__main__":
    key = jax.random.PRNGKey(0)
    k_params, k_z1, k_z2, k_z3 = jax.random.split(key, 4)

    params = init_generator_params(k_params)

    # Test 1: tiny batch -> single full-batch tile, no padding, f32 path (exact).
    B1 = 8
    z1 = jax.random.normal(k_z1, (B1, LATENT_DIM), jnp.float32)
    out1 = jax.block_until_ready(generator_forward(z1, *params))
    ref1 = generator_reference(z1, *params)
    assert out1.shape == (B1, IMG_DIM)
    assert jnp.allclose(out1, ref1, atol=1e-5, rtol=1e-5), "mismatch vs reference (B=8)"

    # Test 2: B > block_b with an exact multiple-of-8 divisor -> 3 grid steps, no padding.
    B2 = 24
    z2 = jax.random.normal(k_z2, (B2, LATENT_DIM), jnp.float32)
    out2 = jax.block_until_ready(generator_forward(z2, *params, block_b=16))
    ref2 = generator_reference(z2, *params)
    assert out2.shape == (B2, IMG_DIM)
    assert jnp.allclose(out2, ref2, atol=1e-5, rtol=1e-5), "mismatch vs reference (B=24)"

    # Test 3: awkward batch (no suitable divisor) -> exercises the padding fallback.
    B3 = 20
    z3 = jax.random.normal(k_z3, (B3, LATENT_DIM), jnp.float32)
    out3 = jax.block_until_ready(generator_forward(z3, *params, block_b=16))
    ref3 = generator_reference(z3, *params)
    assert out3.shape == (B3, IMG_DIM)
    assert jnp.allclose(out3, ref3, atol=1e-5, rtol=1e-5), "mismatch vs reference (B=20, padded)"

    # Test 4: bf16-weights MXU fast path (looser tolerance; output range is [-1, 1]).
    out4 = jax.block_until_ready(generator_forward(z2, *params, weights_bf16=True))
    assert out4.shape == (B2, IMG_DIM)
    assert jnp.allclose(out4, ref2, atol=3e-2, rtol=3e-2), "mismatch vs reference (bf16 weights)"

    print("KERNEL_OK")
</pallas_src>

<mosaic_0001>
module attributes {stable_mosaic.version = 11 : i64} {
  func.func @_generator_kernel(%arg0: i32, %arg1: memref<8x100xf32, #tpu.memory_space<vmem>>, %arg2: memref<100x128xf32, #tpu.memory_space<vmem>>, %arg3: memref<1x128xf32, #tpu.memory_space<vmem>>, %arg4: memref<128x256xf32, #tpu.memory_space<vmem>>, %arg5: memref<1x256xf32, #tpu.memory_space<vmem>>, %arg6: memref<256x784xf32, #tpu.memory_space<vmem>>, %arg7: memref<1x784xf32, #tpu.memory_space<vmem>>, %arg8: memref<8x784xf32, #tpu.memory_space<vmem>>) attributes {dimension_semantics = [#tpu.dimension_semantics<parallel>], iteration_bounds = array<i64: 1>, scalar_prefetch = 0 : i64, scratch_operands = 0 : i64, tpu.core_type = #tpu.core_type<tc>, window_params = [{transform_indices = @transform_0, window_bounds = array<i64: 8, 100>}, {pipeline_mode = #tpu.pipeline_mode<synchronous>, transform_indices = @transform_1, window_bounds = array<i64: 100, 128>}, {pipeline_mode = #tpu.pipeline_mode<synchronous>, transform_indices = @transform_2, window_bounds = array<i64: 1, 128>}, {pipeline_mode = #tpu.pipeline_mode<synchronous>, transform_indices = @transform_3, window_bounds = array<i64: 128, 256>}, {pipeline_mode = #tpu.pipeline_mode<synchronous>, transform_indices = @transform_4, window_bounds = array<i64: 1, 256>}, {pipeline_mode = #tpu.pipeline_mode<synchronous>, transform_indices = @transform_5, window_bounds = array<i64: 256, 784>}, {pipeline_mode = #tpu.pipeline_mode<synchronous>, transform_indices = @transform_6, window_bounds = array<i64: 1, 784>}, {transform_indices = @transform_7, window_bounds = array<i64: 8, 784>}]} {
    %c0 = arith.constant 0 : index
    %c0_0 = arith.constant 0 : index
    %0 = vector.load %arg1[%c0, %c0_0] : memref<8x100xf32, #tpu.memory_space<vmem>>, vector<8x100xf32>
    %c0_1 = arith.constant 0 : index
    %c0_2 = arith.constant 0 : index
    %1 = vector.load %arg2[%c0_1, %c0_2] : memref<100x128xf32, #tpu.memory_space<vmem>>, vector<100x128xf32>
    %cst = arith.constant dense<0.000000e+00> : vector<8x128xf32>
    %2 = tpu.matmul %0, %1, %cst {dimension_numbers = #tpu.dot_dimension_numbers<[1], [0], [0], [1], [0, 0, 1, 1], [], []>} : vector<8x100xf32>, vector<100x128xf32>, vector<8x128xf32> -> vector<8x128xf32>
    %c0_3 = arith.constant 0 : index
    %c0_4 = arith.constant 0 : index
    %3 = vector.load %arg3[%c0_3, %c0_4] : memref<1x128xf32, #tpu.memory_space<vmem>>, vector<1x128xf32>
    %4 = vector.broadcast %3 : vector<1x128xf32> to vector<8x128xf32>
    %5 = arith.addf %2, %4 : vector<8x128xf32>
    %cst_5 = arith.constant 0.000000e+00 : f32
    %6 = vector.broadcast %cst_5 : f32 to vector<8x128xf32>
    %7 = arith.maximumf %5, %6 : vector<8x128xf32>
    %c0_6 = arith.constant 0 : index
    %c0_7 = arith.constant 0 : index
    %8 = vector.load %arg4[%c0_6, %c0_7] : memref<128x256xf32, #tpu.memory_space<vmem>>, vector<128x256xf32>
    %cst_8 = arith.constant dense<0.000000e+00> : vector<8x256xf32>
    %9 = tpu.matmul %7, %8, %cst_8 {dimension_numbers = #tpu.dot_dimension_numbers<[1], [0], [0], [1], [0, 0, 1, 1], [], []>} : vector<8x128xf32>, vector<128x256xf32>, vector<8x256xf32> -> vector<8x256xf32>
    %c0_9 = arith.constant 0 : index
    %c0_10 = arith.constant 0 : index
    %10 = vector.load %arg5[%c0_9, %c0_10] : memref<1x256xf32, #tpu.memory_space<vmem>>, vector<1x256xf32>
    %11 = vector.broadcast %10 : vector<1x256xf32> to vector<8x256xf32>
    %12 = arith.addf %9, %11 : vector<8x256xf32>
    %cst_11 = arith.constant 0.000000e+00 : f32
    %13 = vector.broadcast %cst_11 : f32 to vector<8x256xf32>
    %14 = arith.maximumf %12, %13 : vector<8x256xf32>
    %c0_12 = arith.constant 0 : index
    %c0_13 = arith.constant 0 : index
    %15 = vector.load %arg6[%c0_12, %c0_13] : memref<256x784xf32, #tpu.memory_space<vmem>>, vector<256x784xf32>
    %cst_14 = arith.constant dense<0.000000e+00> : vector<8x784xf32>
    %16 = tpu.matmul %14, %15, %cst_14 {dimension_numbers = #tpu.dot_dimension_numbers<[1], [0], [0], [1], [0, 0, 1, 1], [], []>} : vector<8x256xf32>, vector<256x784xf32>, vector<8x784xf32> -> vector<8x784xf32>
    %c0_15 = arith.constant 0 : index
    %c0_16 = arith.constant 0 : index
    %17 = vector.load %arg7[%c0_15, %c0_16] : memref<1x784xf32, #tpu.memory_space<vmem>>, vector<1x784xf32>
    %18 = vector.broadcast %17 : vector<1x784xf32> to vector<8x784xf32>
    %19 = arith.addf %16, %18 : vector<8x784xf32>
    %20 = math.tanh %19 : vector<8x784xf32>
    %c0_17 = arith.constant 0 : index
    %c0_18 = arith.constant 0 : index
    %21 = vector.load %arg8[%c0_17, %c0_18] : memref<8x784xf32, #tpu.memory_space<vmem>>, vector<8x784xf32>
    tpu.vector_store %arg8[%c0_17, %c0_18], %20 {strides = array<i32>} : memref<8x784xf32, #tpu.memory_space<vmem>>, vector<8x784xf32>,
    return
  }
  func.func @transform_0(%arg0: i32) -> (i32, i32) {
    %c0_i32 = arith.constant 0 : i32
    %c0_i32_0 = arith.constant 0 : i32
    return %arg0, %c0_i32 : i32, i32
  }
  func.func @transform_1(%arg0: i32) -> (i32, i32) {
    %c0_i32 = arith.constant 0 : i32
    %c0_i32_0 = arith.constant 0 : i32
    %c0_i32_1 = arith.constant 0 : i32
    return %c0_i32, %c0_i32_0 : i32, i32
  }
  func.func @transform_2(%arg0: i32) -> (i32, i32) {
    %c0_i32 = arith.constant 0 : i32
    %c0_i32_0 = arith.constant 0 : i32
    %c0_i32_1 = arith.constant 0 : i32
    return %c0_i32, %c0_i32_0 : i32, i32
  }
  func.func @transform_3(%arg0: i32) -> (i32, i32) {
    %c0_i32 = arith.constant 0 : i32
    %c0_i32_0 = arith.constant 0 : i32
    %c0_i32_1 = arith.constant 0 : i32
    return %c0_i32, %c0_i32_0 : i32, i32
  }
  func.func @transform_4(%arg0: i32) -> (i32, i32) {
    %c0_i32 = arith.constant 0 : i32
    %c0_i32_0 = arith.constant 0 : i32
    %c0_i32_1 = arith.constant 0 : i32
    return %c0_i32, %c0_i32_0 : i32, i32
  }
  func.func @transform_5(%arg0: i32) -> (i32, i32) {
    %c0_i32 = arith.constant 0 : i32
    %c0_i32_0 = arith.constant 0 : i32
    %c0_i32_1 = arith.constant 0 : i32
    return %c0_i32, %c0_i32_0 : i32, i32
  }
  func.func @transform_6(%arg0: i32) -> (i32, i32) {
    %c0_i32 = arith.constant 0 : i32
    %c0_i32_0 = arith.constant 0 : i32
    %c0_i32_1 = arith.constant 0 : i32
    return %c0_i32, %c0_i32_0 : i32, i32
  }
  func.func @transform_7(%arg0: i32) -> (i32, i32) {
    %c0_i32 = arith.constant 0 : i32
    %c0_i32_0 = arith.constant 0 : i32
    return %arg0, %c0_i32 : i32, i32
  }
}

</mosaic_0001>

<llo_original>
// kernel: generator_forward.1
$region0: #{generator_forward.1}
  #allocation0 [shape = 'u32[]', space=smem, size = 0x4, offset = 0x4, fixed_abs, tag = 'smem constant byte address 0x4 - core index']
  #allocation1 [shape = 'u32[144,128]{1,0:T(1,128)}', space=vmem, size = 0x12000, scoped, tag = 'internal scratch']
  %s0 = inlined_call_operand.vmem [shape: f32[8,100], index: 0, kind: input, shape index: {}]
  %s1 = inlined_call_operand.vmem [shape: f32[100,128], index: 1, kind: input, shape index: {}]
  %s2 = inlined_call_operand.vmem [shape: f32[1,128], index: 2, kind: input, shape index: {}]
  %s3 = inlined_call_operand.vmem [shape: f32[128,256], index: 3, kind: input, shape index: {}]
  %s4 = inlined_call_operand.vmem [shape: f32[1,256], index: 4, kind: input, shape index: {}]
  %s5 = inlined_call_operand.vmem [shape: f32[256,784], index: 5, kind: input, shape index: {}]
  %s6 = inlined_call_operand.vmem [shape: f32[1,784], index: 6, kind: input, shape index: {}]
  %s7 = inlined_call_operand.hbm [shape: f32[8,784], index: 7, kind: output, shape index: {}]
  %s8 = sld [smem:[#allocation0]]
  $region38: #{generator_forward.1} parent=0
    _
  %s10 = ssub.s32 1, %s8
  %s11 = scalar_select 0, %s10, %s8
  $region1: #{generator_forward.1} parent=0
    #allocation2 [shape = 'u8[28672]{0}', space=vmem, size = 0x7000, scoped, tag = 'output window, operand 0, single buffered']
    #allocation3 [shape = 's32[1]{0}', space=sflag, size = 0x4, scoped, tag = 'scoped memory for generator_forward.1']
    %12 = vsyncpa [#allocation3], 0
    // Predicated region
    $region2: #{generator_forward.1} parent=1 // pred_check
      _
    $region3: #{generator_forward.1} parent=1 // pred_check_branch
      %14 = sbr.rel (0) target = $region5
    $region4: #{generator_forward.1} parent=1 // pred_region
      _
    $region5: #{generator_forward.1} parent=1 // pred_fallthru
      _
    // Predicated region
    $region6: #{generator_forward.1} parent=1 // pred_check
      _
    $region7: #{generator_forward.1} parent=1 // pred_check_branch
      %16 = sbr.rel (0) target = $region9
    $region8: #{generator_forward.1} parent=1 // pred_region
      _
    $region9: #{generator_forward.1} parent=1 // pred_fallthru
      _
    // Predicated region
    $region10: #{generator_forward.1} parent=1 // pred_check
      _
    $region11: #{generator_forward.1} parent=1 // pred_check_branch
      %18 = sbr.rel (0) target = $region13
    $region12: #{generator_forward.1} parent=1 // pred_region
      _
    $region13: #{generator_forward.1} parent=1 // pred_fallthru
      _
    // Predicated region
    $region14: #{generator_forward.1} parent=1 // pred_check
      _
    $region15: #{generator_forward.1} parent=1 // pred_check_branch
      %20 = sbr.rel (0) target = $region17
    $region16: #{generator_forward.1} parent=1 // pred_region
      _
    $region17: #{generator_forward.1} parent=1 // pred_fallthru
      _
    // Predicated region
    $region18: #{generator_forward.1} parent=1 // pred_check
      _
    $region19: #{generator_forward.1} parent=1 // pred_check_branch
      %22 = sbr.rel (0) target = $region21
    $region20: #{generator_forward.1} parent=1 // pred_region
      _
    $region21: #{generator_forward.1} parent=1 // pred_fallthru
      _
    // Predicated region
    $region22: #{generator_forward.1} parent=1 // pred_check
      _
    $region23: #{generator_forward.1} parent=1 // pred_check_branch
      %24 = sbr.rel (0) target = $region25
    $region24: #{generator_forward.1} parent=1 // pred_region
      _
    $region25: #{generator_forward.1} parent=1 // pred_fallthru
      _
    // Predicated region
    $region26: #{generator_forward.1} parent=1 // pred_check
      _
    $region27: #{generator_forward.1} parent=1 // pred_check_branch
      %26 = sbr.rel (0) target = $region29
    $region28: #{generator_forward.1} parent=1 // pred_region
      _
    $region29: #{generator_forward.1} parent=1 // pred_fallthru
      _
    %v27 = vld [vmem:[%s0] sm:$0xff]
    %v28 = vld [vmem:[%s1] sm:$0xff]
    %v29 = vld [vmem:[%s1 + $0x8] sm:$0xff]
    %v30 = vld [vmem:[%s1 + $0x10] sm:$0xff]
    %v31 = vld [vmem:[%s1 + $0x18] sm:$0xff]
    %v32 = vld [vmem:[%s1 + $0x20] sm:$0xff]
    %v33 = vld [vmem:[%s1 + $0x28] sm:$0xff]
    %v34 = vld [vmem:[%s1 + $0x30] sm:$0xff]
    %v35 = vld [vmem:[%s1 + $0x38] sm:$0xff]
    %v36 = vld [vmem:[%s1 + $0x40] sm:$0xff]
    %v37 = vld [vmem:[%s1 + $0x48] sm:$0xff]
    %v38 = vld [vmem:[%s1 + $0x50] sm:$0xff]
    %v39 = vld [vmem:[%s1 + $0x58] sm:$0xff]
    %v40 = vld [vmem:[%s1 + $0x60] sm:$0xf]
    %v41 = vld [vmem:[%s2] sm:$0x1]
    %v43 = vlaneseq
    %v44 = vshrl.u32 %v43, 7
    %v45 = vsub.s32 0, %v44
    %v46 = vrot.slane %v41, %v45
    %vm48 = vcmask 818176
    %v50 = vsel %vm48, %v27, 0
    %vm52 = vcmask 1043456
    %v54 = vsel %vm52, %v40, 0
    %56 = vmatprep.subr.mxu0 0.0
    %57 = vmatpush1.msra.mxu0 %v28
    %58 = vmatprep.subr.mxu0 0.0
    %59 = vmatpush1.msra.mxu0 %v29
    %60 = vmatprep.subr.mxu0 0.0
    %61 = vmatpush1.msra.mxu0 %v30
    %62 = vmatprep.subr.mxu0 0.0
    %63 = vmatpush1.msra.mxu0 %v31
    %64 = vmatprep.subr.mxu0 0.0
    %65 = vmatpush1.msra.mxu0 %v32
    %66 = vmatprep.subr.mxu0 0.0
    %67 = vmatpush1.msra.mxu0 %v33
    %68 = vmatprep.subr.mxu0 0.0
    %69 = vmatpush1.msra.mxu0 %v34
    %70 = vmatprep.subr.mxu0 0.0
    %71 = vmatpush1.msra.mxu0 %v35
    %72 = vmatprep.subr.mxu0 0.0
    %73 = vmatpush1.msra.mxu0 %v36
    %74 = vmatprep.subr.mxu0 0.0
    %75 = vmatpush1.msra.mxu0 %v37
    %76 = vmatprep.subr.mxu0 0.0
    %77 = vmatpush1.msra.mxu0 %v38
    %78 = vmatprep.subr.mxu0 0.0
    %79 = vmatpush1.msra.mxu0 %v39
    %80 = vmatprep.subr.mxu0 0.0
    %81 = vmatpush1.msra.mxu0 %v54
    %82 = vmatprep.subr.mxu0 0.0
    %83 = vmatpush1.msra.mxu0 0.0
    %84 = vmatprep.subr.mxu0 0.0
    %85 = vmatpush1.msra.mxu0 0.0
    %86 = vmatprep.subr.mxu0 0.0
    %87 = vmatpush1.msra.mxu0 0.0
    %88 = vmatprep.subr.mxu0 0.0
    %89 = vmatpush1.msra.mxu0 0.0
    %90 = vmatprep.subr.mxu0 0.0
    %91 = vmatpush1.msra.mxu0 0.0
    %92 = vmatprep.subr.mxu0 0.0
    %93 = vmatpush1.msra.mxu0 0.0
    %94 = vmatprep.subr.mxu0 0.0
    %95 = vmatpush1.msra.mxu0 0.0
    %96 = vmatprep.subr.mxu0 0.0
    %97 = vmatpush1.msra.mxu0 0.0
    %98 = vmatprep.subr.mxu0 0.0
    %99 = vmatpush1.msra.mxu0 0.0
    %100 = vmatprep.subr.mxu0 0.0
    %101 = vmatpush1.msra.mxu0 0.0
    %102 = vmatprep.subr.mxu0 0.0
    %103 = vmatpush1.msra.mxu0 0.0
    %104 = vmatprep.subr.mxu0 0.0
    %105 = vmatpush1.msra.mxu0 0.0
    %106 = vmatprep.subr.mxu0 0.0
    %107 = vmatpush1.msra.mxu0 0.0
    %108 = vmatprep.subr.mxu0 0.0
    %109 = vmatpush1.msra.mxu0 0.0
    %110 = vmatprep.subr.mxu0 0.0
    %111 = vmatpush1.msra.mxu0 0.0
    %112 = vmatprep.subr.mxu0 0.0
    %113 = vmatpush1.msra.mxu0 0.0
    %114 = vmatprep.subr.mxu0 0.0
    %115 = vmatpush1.msra.mxu0 0.0
    %116 = vmatprep.subr.mxu0 0.0
    %117 = vmatpush1.msra.mxu0 0.0
    %118 = vmatprep.subr.mxu0 0.0
    %119 = vmatpush1.msra.mxu0 0.0
    %120 = vmatprep.mubr.f32.mxu0 0.0
    %121 = vmatmul.mubr.f32.gmra.mrb[0].mxu0 %v50
    %v122 = vpop.f32.mrb[0].mxu0
    %v123 = vadd.f32 %v46, %v122
    %v124 = vpop.f32.mrb[0].mxu0
    %125 = vdwg.mxu0
    %v126 = vmax.f32 %v123, 0.0
    %v127 = vld [vmem:[%s3] sm:$0xff]
    %v128 = vld [vmem:[%s3 + $0x8] sm:$0xff]
    %v129 = vld [vmem:[%s3 + $0x10] sm:$0xff]
    %v130 = vld [vmem:[%s3 + $0x18] sm:$0xff]
    %v131 = vld [vmem:[%s3 + $0x20] sm:$0xff]
    %v132 = vld [vmem:[%s3 + $0x28] sm:$0xff]
    %v133 = vld [vmem:[%s3 + $0x30] sm:$0xff]
    %v134 = vld [vmem:[%s3 + $0x38] sm:$0xff]
    %v135 = vld [vmem:[%s3 + $0x40] sm:$0xff]
    %v136 = vld [vmem:[%s3 + $0x48] sm:$0xff]
    %v137 = vld [vmem:[%s3 + $0x50] sm:$0xff]
    %v138 = vld [vmem:[%s3 + $0x58] sm:$0xff]
    %v139 = vld [vmem:[%s3 + $0x60] sm:$0xff]
    %v140 = vld [vmem:[%s3 + $0x68] sm:$0xff]
    %v141 = vld [vmem:[%s3 + $0x70] sm:$0xff]
    %v142 = vld [vmem:[%s3 + $0x78] sm:$0xff]
    %v143 = vld [vmem:[%s3 + $0x80] sm:$0xff]
    %v144 = vld [vmem:[%s3 + $0x88] sm:$0xff]
    %v145 = vld [vmem:[%s3 + $0x90] sm:$0xff]
    %v146 = vld [vmem:[%s3 + $0x98] sm:$0xff]
    %v147 = vld [vmem:[%s3 + $0xa0] sm:$0xff]
    %v148 = vld [vmem:[%s3 + $0xa8] sm:$0xff]
    %v149 = vld [vmem:[%s3 + $0xb0] sm:$0xff]
    %v150 = vld [vmem:[%s3 + $0xb8] sm:$0xff]
    %v151 = vld [vmem:[%s3 + $0xc0] sm:$0xff]
    %v152 = vld [vmem:[%s3 + $0xc8] sm:$0xff]
    %v153 = vld [vmem:[%s3 + $0xd0] sm:$0xff]
    %v154 = vld [vmem:[%s3 + $0xd8] sm:$0xff]
    %v155 = vld [vmem:[%s3 + $0xe0] sm:$0xff]
    %v156 = vld [vmem:[%s3 + $0xe8] sm:$0xff]
    %v157 = vld [vmem:[%s3 + $0xf0] sm:$0xff]
    %v158 = vld [vmem:[%s3 + $0xf8] sm:$0xff]
    %v159 = vld [vmem:[%s4] sm:$0x3]
    %v161 = vlaneseq
    %v162 = vshrl.u32 %v161, 7
    %v163 = vsub.s32 0, %v162
    %v164 = vrot.slane %v159, %v163
    %v165 = vlaneseq
    %v166 = vshrl.u32 %v165, 7
    %v167 = vsub.s32 1, %v166
    %v168 = vrot.slane %v159, %v167
    %171 = vmatprep.subr.mxu0 %v128
    %172 = vmatpush1.msra.mxu0 %v127
    %173 = vmatprep.subr.mxu0 %v130
    %174 = vmatpush1.msra.mxu0 %v129
    %175 = vmatprep.subr.mxu0 %v132
    %176 = vmatpush1.msra.mxu0 %v131
    %177 = vmatprep.subr.mxu0 %v134
    %178 = vmatpush1.msra.mxu0 %v133
    %179 = vmatprep.subr.mxu0 %v136
    %180 = vmatpush1.msra.mxu0 %v135
    %181 = vmatprep.subr.mxu0 %v138
    %182 = vmatpush1.msra.mxu0 %v137
    %183 = vmatprep.subr.mxu0 %v140
    %184 = vmatpush1.msra.mxu0 %v139
    %185 = vmatprep.subr.mxu0 %v142
    %186 = vmatpush1.msra.mxu0 %v141
    %187 = vmatprep.subr.mxu0 %v144
    %188 = vmatpush1.msra.mxu0 %v143
    %189 = vmatprep.subr.mxu0 %v146
    %190 = vmatpush1.msra.mxu0 %v145
    %191 = vmatprep.subr.mxu0 %v148
    %192 = vmatpush1.msra.mxu0 %v147
    %193 = vmatprep.subr.mxu0 %v150
    %194 = vmatpush1.msra.mxu0 %v149
    %195 = vmatprep.subr.mxu0 %v152
    %196 = vmatpush1.msra.mxu0 %v151
    %197 = vmatprep.subr.mxu0 %v154
    %198 = vmatpush1.msra.mxu0 %v153
    %199 = vmatprep.subr.mxu0 %v156
    %200 = vmatpush1.msra.mxu0 %v155
    %201 = vmatprep.subr.mxu0 %v158
    %202 = vmatpush1.msra.mxu0 %v157
    %203 = vmatprep.subr.mxu0 0.0
    %204 = vmatpush1.msra.mxu0 0.0
    %205 = vmatprep.subr.mxu0 0.0
    %206 = vmatpush1.msra.mxu0 0.0
    %207 = vmatprep.subr.mxu0 0.0
    %208 = vmatpush1.msra.mxu0 0.0
    %209 = vmatprep.subr.mxu0 0.0
    %210 = vmatpush1.msra.mxu0 0.0
    %211 = vmatprep.subr.mxu0 0.0
    %212 = vmatpush1.msra.mxu0 0.0
    %213 = vmatprep.subr.mxu0 0.0
    %214 = vmatpush1.msra.mxu0 0.0
    %215 = vmatprep.subr.mxu0 0.0
    %216 = vmatpush1.msra.mxu0 0.0
    %217 = vmatprep.subr.mxu0 0.0
    %218 = vmatpush1.msra.mxu0 0.0
    %219 = vmatprep.subr.mxu0 0.0
    %220 = vmatpush1.msra.mxu0 0.0
    %221 = vmatprep.subr.mxu0 0.0
    %222 = vmatpush1.msra.mxu0 0.0
    %223 = vmatprep.subr.mxu0 0.0
    %224 = vmatpush1.msra.mxu0 0.0
    %225 = vmatprep.subr.mxu0 0.0
    %226 = vmatpush1.msra.mxu0 0.0
    %227 = vmatprep.subr.mxu0 0.0
    %228 = vmatpush1.msra.mxu0 0.0
    %229 = vmatprep.subr.mxu0 0.0
    %230 = vmatpush1.msra.mxu0 0.0
    %231 = vmatprep.subr.mxu0 0.0
    %232 = vmatpush1.msra.mxu0 0.0
    %233 = vmatprep.subr.mxu0 0.0
    %234 = vmatpush1.msra.mxu0 0.0
    %235 = vmatprep.mubr.f32.mxu0 0.0
    %236 = vmatmul.mubr.f32.gmra.mrb[0].mxu0 %v126
    %v237 = vpop.f32.mrb[0].mxu0
    %v238 = vadd.f32 %v164, %v237
    %v239 = vpop.f32.mrb[0].mxu0
    %v240 = vadd.f32 %v168, %v239
    %241 = vdwg.mxu0
    %v242 = vmax.f32 %v238, 0.0
    %v243 = vmax.f32 %v240, 0.0
    %v244 = vld [vmem:[%s5] sm:$0xff]
    %v245 = vld [vmem:[%s5 + $0x8] sm:$0xff]
    %v246 = vld [vmem:[%s5 + $0x10] sm:$0xff]
    %v247 = vld [vmem:[%s5 + $0x18] sm:$0xff]
    %v248 = vld [vmem:[%s5 + $0x20] sm:$0xff]
    %v249 = vld [vmem:[%s5 + $0x28] sm:$0xff]
    %v250 = vld [vmem:[%s5 + $0x30] sm:$0xff]
    %v251 = vld [vmem:[%s5 + $0x38] sm:$0xff]
    %v252 = vld [vmem:[%s5 + $0x40] sm:$0xff]
    %v253 = vld [vmem:[%s5 + $0x48] sm:$0xff]
    %v254 = vld [vmem:[%s5 + $0x50] sm:$0xff]
    %v255 = vld [vmem:[%s5 + $0x58] sm:$0xff]
    %v256 = vld [vmem:[%s5 + $0x60] sm:$0xff]
    %v257 = vld [vmem:[%s5 + $0x68] sm:$0xff]
    %v258 = vld [vmem:[%s5 + $0x70] sm:$0xff]
    %v259 = vld [vmem:[%s5 + $0x78] sm:$0xff]
    %v260 = vld [vmem:[%s5 + $0x80] sm:$0xff]
    %v261 = vld [vmem:[%s5 + $0x88] sm:$0xff]
    %v262 = vld [vmem:[%s5 + $0x90] sm:$0xff]
    %v263 = vld [vmem:[%s5 + $0x98] sm:$0xff]
    %v264 = vld [vmem:[%s5 + $0xa0] sm:$0xff]
    %v265 = vld [vmem:[%s5 + $0xa8] sm:$0xff]
    %v266 = vld [vmem:[%s5 + $0xb0] sm:$0xff]
    %v267 = vld [vmem:[%s5 + $0xb8] sm:$0xff]
    %v268 = vld [vmem:[%s5 + $0xc0] sm:$0xff]
    %v269 = vld [vmem:[%s5 + $0xc8] sm:$0xff]
    %v270 = vld [vmem:[%s5 + $0xd0] sm:$0xff]
    %v271 = vld [vmem:[%s5 + $0xd8] sm:$0xff]
    %v272 = vld [vmem:[%s5 + $0xe0] sm:$0xff]
    %v273 = vld [vmem:[%s5 + $0xe8] sm:$0xff]
    %v274 = vld [vmem:[%s5 + $0xf0] sm:$0xff]
    %v275 = vld [vmem:[%s5 + $0xf8] sm:$0xff]
    %v276 = vld [vmem:[%s5 + $0x100] sm:$0xff]
    %v277 = vld [vmem:[%s5 + $0x108] sm:$0xff]
    %v278 = vld [vmem:[%s5 + $0x110] sm:$0xff]
    %v279 = vld [vmem:[%s5 + $0x118] sm:$0xff]
    %v280 = vld [vmem:[%s5 + $0x120] sm:$0xff]
    %v281 = vld [vmem:[%s5 + $0x128] sm:$0xff]
    %v282 = vld [vmem:[%s5 + $0x130] sm:$0xff]
    %v283 = vld [vmem:[%s5 + $0x138] sm:$0xff]
    %v284 = vld [vmem:[%s5 + $0x140] sm:$0xff]
    %v285 = vld [vmem:[%s5 + $0x148] sm:$0xff]
    %v286 = vld [vmem:[%s5 + $0x150] sm:$0xff]
    %v287 = vld [vmem:[%s5 + $0x158] sm:$0xff]
    %v288 = vld [vmem:[%s5 + $0x160] sm:$0xff]
    %v289 = vld [vmem:[%s5 + $0x168] sm:$0xff]
    %v290 = vld [vmem:[%s5 + $0x170] sm:$0xff]
    %v291 = vld [vmem:[%s5 + $0x178] sm:$0xff]
    %v292 = vld [vmem:[%s5 + $0x180] sm:$0xff]
    %v293 = vld [vmem:[%s5 + $0x188] sm:$0xff]
    %v294 = vld [vmem:[%s5 + $0x190] sm:$0xff]
    %v295 = vld [vmem:[%s5 + $0x198] sm:$0xff]
    %v296 = vld [vmem:[%s5 + $0x1a0] sm:$0xff]
    %v297 = vld [vmem:[%s5 + $0x1a8] sm:$0xff]
    %v298 = vld [vmem:[%s5 + $0x1b0] sm:$0xff]
    %v299 = vld [vmem:[%s5 + $0x1b8] sm:$0xff]
    %v300 = vld [vmem:[%s5 + $0x1c0] sm:$0xff]
    %v301 = vld [vmem:[%s5 + $0x1c8] sm:$0xff]
    %v302 = vld [vmem:[%s5 + $0x1d0] sm:$0xff]
    %v303 = vld [vmem:[%s5 + $0x1d8] sm:$0xff]
    %v304 = vld [vmem:[%s5 + $0x1e0] sm:$0xff]
    %v305 = vld [vmem:[%s5 + $0x1e8] sm:$0xff]
    %v306 = vld [vmem:[%s5 + $0x1f0] sm:$0xff]
    %v307 = vld [vmem:[%s5 + $0x1f8] sm:$0xff]
    %v308 = vld [vmem:[%s5 + $0x200] sm:$0xff]
    %v309 = vld [vmem:[%s5 + $0x208] sm:$0xff]
    %v310 = vld [vmem:[%s5 + $0x210] sm:$0xff]
    %v311 = vld [vmem:[%s5 + $0x218] sm:$0xff]
    %v312 = vld [vmem:[%s5 + $0x220] sm:$0xff]
    %v313 = vld [vmem:[%s5 + $0x228] sm:$0xff]
    %v314 = vld [vmem:[%s5 + $0x230] sm:$0xff]
    %v315 = vld [vmem:[%s5 + $0x238] sm:$0xff]
    %v316 = vld [vmem:[%s5 + $0x240] sm:$0xff]
    %v317 = vld [vmem:[%s5 + $0x248] sm:$0xff]
    %v318 = vld [vmem:[%s5 + $0x250] sm:$0xff]
    %v319 = vld [vmem:[%s5 + $0x258] sm:$0xff]
    %v320 = vld [vmem:[%s5 + $0x260] sm:$0xff]
    %v321 = vld [vmem:[%s5 + $0x268] sm:$0xff]
    %v322 = vld [vmem:[%s5 + $0x270] sm:$0xff]
    %v323 = vld [vmem:[%s5 + $0x278] sm:$0xff]
    %v324 = vld [vmem:[%s5 + $0x280] sm:$0xff]
    %v325 = vld [vmem:[%s5 + $0x288] sm:$0xff]
    %v326 = vld [vmem:[%s5 + $0x290] sm:$0xff]
    %v327 = vld [vmem:[%s5 + $0x298] sm:$0xff]
    %v328 = vld [vmem:[%s5 + $0x2a0] sm:$0xff]
    %v329 = vld [vmem:[%s5 + $0x2a8] sm:$0xff]
    %v330 = vld [vmem:[%s5 + $0x2b0] sm:$0xff]
    %v331 = vld [vmem:[%s5 + $0x2b8] sm:$0xff]
    %v332 = vld [vmem:[%s5 + $0x2c0] sm:$0xff]
    %v333 = vld [vmem:[%s5 + $0x2c8] sm:$0xff]
    %v334 = vld [vmem:[%s5 + $0x2d0] sm:$0xff]
    %v335 = vld [vmem:[%s5 + $0x2d8] sm:$0xff]
    %v336 = vld [vmem:[%s5 + $0x2e0] sm:$0xff]
    %v337 = vld [vmem:[%s5 + $0x2e8] sm:$0xff]
    %v338 = vld [vmem:[%s5 + $0x2f0] sm:$0xff]
    %v339 = vld [vmem:[%s5 + $0x2f8] sm:$0xff]
    %v340 = vld [vmem:[%s5 + $0x300] sm:$0xff]
    %v341 = vld [vmem:[%s5 + $0x308] sm:$0xff]
    %v342 = vld [vmem:[%s5 + $0x310] sm:$0xff]
    %v343 = vld [vmem:[%s5 + $0x318] sm:$0xff]
    %v344 = vld [vmem:[%s5 + $0x320] sm:$0xff]
    %v345 = vld [vmem:[%s5 + $0x328] sm:$0xff]
    %v346 = vld [vmem:[%s5 + $0x330] sm:$0xff]
    %v347 = vld [vmem:[%s5 + $0x338] sm:$0xff]
    %v348 = vld [vmem:[%s5 + $0x340] sm:$0xff]
    %v349 = vld [vmem:[%s5 + $0x348] sm:$0xff]
    %v350 = vld [vmem:[%s5 + $0x350] sm:$0xff]
    %v351 = vld [vmem:[%s5 + $0x358] sm:$0xff]
    %v352 = vld [vmem:[%s5 + $0x360] sm:$0xff]
    %v353 = vld [vmem:[%s5 + $0x368] sm:$0xff]
    %v354 = vld [vmem:[%s5 + $0x370] sm:$0xff]
    %v355 = vld [vmem:[%s5 + $0x378] sm:$0xff]
    %v356 = vld [vmem:[%s5 + $0x380] sm:$0xff]
    %v357 = vld [vmem:[%s5 + $0x388] sm:$0xff]
    %v358 = vld [vmem:[%s5 + $0x390] sm:$0xff]
    %v359 = vld [vmem:[%s5 + $0x398] sm:$0xff]
    %v360 = vld [vmem:[%s5 + $0x3a0] sm:$0xff]
    %v361 = vld [vmem:[%s5 + $0x3a8] sm:$0xff]
    %v362 = vld [vmem:[%s5 + $0x3b0] sm:$0xff]
    %v363 = vld [vmem:[%s5 + $0x3b8] sm:$0xff]
    %v364 = vld [vmem:[%s5 + $0x3c0] sm:$0xff]
    %v365 = vld [vmem:[%s5 + $0x3c8] sm:$0xff]
    %v366 = vld [vmem:[%s5 + $0x3d0] sm:$0xff]
    %v367 = vld [vmem:[%s5 + $0x3d8] sm:$0xff]
    %v368 = vld [vmem:[%s5 + $0x3e0] sm:$0xff]
    %v369 = vld [vmem:[%s5 + $0x3e8] sm:$0xff]
    %v370 = vld [vmem:[%s5 + $0x3f0] sm:$0xff]
    %v371 = vld [vmem:[%s5 + $0x3f8] sm:$0xff]
    %v372 = vld [vmem:[%s5 + $0x400] sm:$0xff]
    %v373 = vld [vmem:[%s5 + $0x408] sm:$0xff]
    %v374 = vld [vmem:[%s5 + $0x410] sm:$0xff]
    %v375 = vld [vmem:[%s5 + $0x418] sm:$0xff]
    %v376 = vld [vmem:[%s5 + $0x420] sm:$0xff]
    %v377 = vld [vmem:[%s5 + $0x428] sm:$0xff]
    %v378 = vld [vmem:[%s5 + $0x430] sm:$0xff]
    %v379 = vld [vmem:[%s5 + $0x438] sm:$0xff]
    %v380 = vld [vmem:[%s5 + $0x440] sm:$0xff]
    %v381 = vld [vmem:[%s5 + $0x448] sm:$0xff]
    %v382 = vld [vmem:[%s5 + $0x450] sm:$0xff]
    %v383 = vld [vmem:[%s5 + $0x458] sm:$0xff]
    %v384 = vld [vmem:[%s5 + $0x460] sm:$0xff]
    %v385 = vld [vmem:[%s5 + $0x468] sm:$0xff]
    %v386 = vld [vmem:[%s5 + $0x470] sm:$0xff]
    %v387 = vld [vmem:[%s5 + $0x478] sm:$0xff]
    %v388 = vld [vmem:[%s5 + $0x480] sm:$0xff]
    %v389 = vld [vmem:[%s5 + $0x488] sm:$0xff]
    %v390 = vld [vmem:[%s5 + $0x490] sm:$0xff]
    %v391 = vld [vmem:[%s5 + $0x498] sm:$0xff]
    %v392 = vld [vmem:[%s5 + $0x4a0] sm:$0xff]
    %v393 = vld [vmem:[%s5 + $0x4a8] sm:$0xff]
    %v394 = vld [vmem:[%s5 + $0x4b0] sm:$0xff]
    %v395 = vld [vmem:[%s5 + $0x4b8] sm:$0xff]
    %v396 = vld [vmem:[%s5 + $0x4c0] sm:$0xff]
    %v397 = vld [vmem:[%s5 + $0x4c8] sm:$0xff]
    %v398 = vld [vmem:[%s5 + $0x4d0] sm:$0xff]
    %v399 = vld [vmem:[%s5 + $0x4d8] sm:$0xff]
    %v400 = vld [vmem:[%s5 + $0x4e0] sm:$0xff]
    %v401 = vld [vmem:[%s5 + $0x4e8] sm:$0xff]
    %v402 = vld [vmem:[%s5 + $0x4f0] sm:$0xff]
    %v403 = vld [vmem:[%s5 + $0x4f8] sm:$0xff]
    %v404 = vld [vmem:[%s5 + $0x500] sm:$0xff]
    %v405 = vld [vmem:[%s5 + $0x508] sm:$0xff]
    %v406 = vld [vmem:[%s5 + $0x510] sm:$0xff]
    %v407 = vld [vmem:[%s5 + $0x518] sm:$0xff]
    %v408 = vld [vmem:[%s5 + $0x520] sm:$0xff]
    %v409 = vld [vmem:[%s5 + $0x528] sm:$0xff]
    %v410 = vld [vmem:[%s5 + $0x530] sm:$0xff]
    %v411 = vld [vmem:[%s5 + $0x538] sm:$0xff]
    %v412 = vld [vmem:[%s5 + $0x540] sm:$0xff]
    %v413 = vld [vmem:[%s5 + $0x548] sm:$0xff]
    %v414 = vld [vmem:[%s5 + $0x550] sm:$0xff]
    %v415 = vld [vmem:[%s5 + $0x558] sm:$0xff]
    %v416 = vld [vmem:[%s5 + $0x560] sm:$0xff]
    %v417 = vld [vmem:[%s5 + $0x568] sm:$0xff]
    %v418 = vld [vmem:[%s5 + $0x570] sm:$0xff]
    %v419 = vld [vmem:[%s5 + $0x578] sm:$0xff]
    %v420 = vld [vmem:[%s5 + $0x580] sm:$0xff]
    %v421 = vld [vmem:[%s5 + $0x588] sm:$0xff]
    %v422 = vld [vmem:[%s5 + $0x590] sm:$0xff]
    %v423 = vld [vmem:[%s5 + $0x598] sm:$0xff]
    %v424 = vld [vmem:[%s5 + $0x5a0] sm:$0xff]
    %v425 = vld [vmem:[%s5 + $0x5a8] sm:$0xff]
    %v426 = vld [vmem:[%s5 + $0x5b0] sm:$0xff]
    %v427 = vld [vmem:[%s5 + $0x5b8] sm:$0xff]
    %v428 = vld [vmem:[%s5 + $0x5c0] sm:$0xff]
    %v429 = vld [vmem:[%s5 + $0x5c8] sm:$0xff]
    %v430 = vld [vmem:[%s5 + $0x5d0] sm:$0xff]
    %v431 = vld [vmem:[%s5 + $0x5d8] sm:$0xff]
    %v432 = vld [vmem:[%s5 + $0x5e0] sm:$0xff]
    %v433 = vld [vmem:[%s5 + $0x5e8] sm:$0xff]
    %v434 = vld [vmem:[%s5 + $0x5f0] sm:$0xff]
    %v435 = vld [vmem:[%s5 + $0x5f8] sm:$0xff]
    %v436 = vld [vmem:[%s5 + $0x600] sm:$0xff]
    %v437 = vld [vmem:[%s5 + $0x608] sm:$0xff]
    %v438 = vld [vmem:[%s5 + $0x610] sm:$0xff]
    %v439 = vld [vmem:[%s5 + $0x618] sm:$0xff]
    %v440 = vld [vmem:[%s5 + $0x620] sm:$0xff]
    %v441 = vld [vmem:[%s5 + $0x628] sm:$0xff]
    %v442 = vld [vmem:[%s5 + $0x630] sm:$0xff]
    %v443 = vld [vmem:[%s5 + $0x638] sm:$0xff]
    %v444 = vld [vmem:[%s5 + $0x640] sm:$0xff]
    %v445 = vld [vmem:[%s5 + $0x648] sm:$0xff]
    %v446 = vld [vmem:[%s5 + $0x650] sm:$0xff]
    %v447 = vld [vmem:[%s5 + $0x658] sm:$0xff]
    %v448 = vld [vmem:[%s5 + $0x660] sm:$0xff]
    %v449 = vld [vmem:[%s5 + $0x668] sm:$0xff]
    %v450 = vld [vmem:[%s5 + $0x670] sm:$0xff]
    %v451 = vld [vmem:[%s5 + $0x678] sm:$0xff]
    %v452 = vld [vmem:[%s5 + $0x680] sm:$0xff]
    %v453 = vld [vmem:[%s5 + $0x688] sm:$0xff]
    %v454 = vld [vmem:[%s5 + $0x690] sm:$0xff]
    %v455 = vld [vmem:[%s5 + $0x698] sm:$0xff]
    %v456 = vld [vmem:[%s5 + $0x6a0] sm:$0xff]
    %v457 = vld [vmem:[%s5 + $0x6a8] sm:$0xff]
    %v458 = vld [vmem:[%s5 + $0x6b0] sm:$0xff]
    %v459 = vld [vmem:[%s5 + $0x6b8] sm:$0xff]
    %v460 = vld [vmem:[%s5 + $0x6c0] sm:$0xff]
    %v461 = vld [vmem:[%s5 + $0x6c8] sm:$0xff]
    %v462 = vld [vmem:[%s5 + $0x6d0] sm:$0xff]
    %v463 = vld [vmem:[%s5 + $0x6d8] sm:$0xff]
    %v464 = vld [vmem:[%s5 + $0x6e0] sm:$0xff]
    %v465 = vld [vmem:[%s5 + $0x6e8] sm:$0xff]
    %v466 = vld [vmem:[%s5 + $0x6f0] sm:$0xff]
    %v467 = vld [vmem:[%s5 + $0x6f8] sm:$0xff]
    %v468 = vld [vmem:[%s6] sm:$0x7f]
    %v470 = vlaneseq
    %v471 = vshrl.u32 %v470, 7
    %v472 = vsub.s32 0, %v471
    %v473 = vrot.slane %v468, %v472
    %v474 = vlaneseq
    %v475 = vshrl.u32 %v474, 7
    %v476 = vsub.s32 1, %v475
    %v477 = vrot.slane %v468, %v476
    %v478 = vlaneseq
    %v479 = vshrl.u32 %v478, 7
    %v480 = vsub.s32 2, %v479
    %v481 = vrot.slane %v468, %v480
    %v482 = vlaneseq
    %v483 = vshrl.u32 %v482, 7
    %v484 = vsub.s32 3, %v483
    %v485 = vrot.slane %v468, %v484
    %v486 = vlaneseq
    %v487 = vshrl.u32 %v486, 7
    %v488 = vsub.s32 4, %v487
    %v489 = vrot.slane %v468, %v488
    %v490 = vlaneseq
    %v491 = vshrl.u32 %v490, 7
    %v492 = vsub.s32 5, %v491
    %v493 = vrot.slane %v468, %v492
    %v494 = vlaneseq
    %v495 = vshrl.u32 %v494, 7
    %v496 = vsub.s32 6, %v495
    %v497 = vrot.slane %v468, %v496
    %505 = vmatprep.subr.mxu0 %v245
    %506 = vmatpush1.msra.mxu0 %v244
    %507 = vmatprep.subr.mxu0 %v252
    %508 = vmatpush1.msra.mxu0 %v251
    %509 = vmatprep.subr.mxu0 %v259
    %510 = vmatpush1.msra.mxu0 %v258
    %511 = vmatprep.subr.mxu0 %v266
    %512 = vmatpush1.msra.mxu0 %v265
    %513 = vmatprep.subr.mxu0 %v273
    %514 = vmatpush1.msra.mxu0 %v272
    %515 = vmatprep.subr.mxu0 %v280
    %516 = vmatpush1.msra.mxu0 %v279
    %517 = vmatprep.subr.mxu0 %v287
    %518 = vmatpush1.msra.mxu0 %v286
    %519 = vmatprep.subr.mxu0 %v294
    %520 = vmatpush1.msra.mxu0 %v293
    %521 = vmatprep.subr.mxu0 %v301
    %522 = vmatpush1.msra.mxu0 %v300
    %523 = vmatprep.subr.mxu0 %v308
    %524 = vmatpush1.msra.mxu0 %v307
    %525 = vmatprep.subr.mxu0 %v315
    %526 = vmatpush1.msra.mxu0 %v314
    %527 = vmatprep.subr.mxu0 %v322
    %528 = vmatpush1.msra.mxu0 %v321
    %529 = vmatprep.subr.mxu0 %v329
    %530 = vmatpush1.msra.mxu0 %v328
    %531 = vmatprep.subr.mxu0 %v336
    %532 = vmatpush1.msra.mxu0 %v335
    %533 = vmatprep.subr.mxu0 %v343
    %534 = vmatpush1.msra.mxu0 %v342
    %535 = vmatprep.subr.mxu0 %v350
    %536 = vmatpush1.msra.mxu0 %v349
    %537 = vmatprep.subr.mxu0 %v357
    %538 = vmatpush1.msra.mxu0 %v356
    %539 = vmatprep.subr.mxu0 %v364
    %540 = vmatpush1.msra.mxu0 %v363
    %541 = vmatprep.subr.mxu0 %v371
    %542 = vmatpush1.msra.mxu0 %v370
    %543 = vmatprep.subr.mxu0 %v378
    %544 = vmatpush1.msra.mxu0 %v377
    %545 = vmatprep.subr.mxu0 %v385
    %546 = vmatpush1.msra.mxu0 %v384
    %547 = vmatprep.subr.mxu0 %v392
    %548 = vmatpush1.msra.mxu0 %v391
    %549 = vmatprep.subr.mxu0 %v399
    %550 = vmatpush1.msra.mxu0 %v398
    %551 = vmatprep.subr.mxu0 %v406
    %552 = vmatpush1.msra.mxu0 %v405
    %553 = vmatprep.subr.mxu0 %v413
    %554 = vmatpush1.msra.mxu0 %v412
    %555 = vmatprep.subr.mxu0 %v420
    %556 = vmatpush1.msra.mxu0 %v419
    %557 = vmatprep.subr.mxu0 %v427
    %558 = vmatpush1.msra.mxu0 %v426
    %559 = vmatprep.subr.mxu0 %v434
    %560 = vmatpush1.msra.mxu0 %v433
    %561 = vmatprep.subr.mxu0 %v441
    %562 = vmatpush1.msra.mxu0 %v440
    %563 = vmatprep.subr.mxu0 %v448
    %564 = vmatpush1.msra.mxu0 %v447
    %565 = vmatprep.subr.mxu0 %v455
    %566 = vmatpush1.msra.mxu0 %v454
    %567 = vmatprep.subr.mxu0 %v462
    %568 = vmatpush1.msra.mxu0 %v461
    %569 = vmatprep.mubr.f32.mxu0 %v243
    %570 = vmatmul.mubr.f32.gmra.mrb[0].mxu0 %v242
    %v571 = vpop.f32.mrb[0].mxu0
    %v572 = vadd.f32 %v473, %v571
    %v573 = vpop.f32.mrb[0].mxu0
    %v574 = vadd.f32 %v477, %v573
    %575 = vdwg.mxu0
    %576 = vmatprep.subr.mxu0 %v247
    %577 = vmatpush1.msra.mxu0 %v246
    %578 = vmatprep.subr.mxu0 %v254
    %579 = vmatpush1.msra.mxu0 %v253
    %580 = vmatprep.subr.mxu0 %v261
    %581 = vmatpush1.msra.mxu0 %v260
    %582 = vmatprep.subr.mxu0 %v268
    %583 = vmatpush1.msra.mxu0 %v267
    %584 = vmatprep.subr.mxu0 %v275
    %585 = vmatpush1.msra.mxu0 %v274
    %586 = vmatprep.subr.mxu0 %v282
    %587 = vmatpush1.msra.mxu0 %v281
    %588 = vmatprep.subr.mxu0 %v289
    %589 = vmatpush1.msra.mxu0 %v288
    %590 = vmatprep.subr.mxu0 %v296
    %591 = vmatpush1.msra.mxu0 %v295
    %592 = vmatprep.subr.mxu0 %v303
    %593 = vmatpush1.msra.mxu0 %v302
    %594 = vmatprep.subr.mxu0 %v310
    %595 = vmatpush1.msra.mxu0 %v309
    %596 = vmatprep.subr.mxu0 %v317
    %597 = vmatpush1.msra.mxu0 %v316
    %598 = vmatprep.subr.mxu0 %v324
    %599 = vmatpush1.msra.mxu0 %v323
    %600 = vmatprep.subr.mxu0 %v331
    %601 = vmatpush1.msra.mxu0 %v330
    %602 = vmatprep.subr.mxu0 %v338
    %603 = vmatpush1.msra.mxu0 %v337
    %604 = vmatprep.subr.mxu0 %v345
    %605 = vmatpush1.msra.mxu0 %v344
    %606 = vmatprep.subr.mxu0 %v352
    %607 = vmatpush1.msra.mxu0 %v351
    %608 = vmatprep.subr.mxu0 %v359
    %609 = vmatpush1.msra.mxu0 %v358
    %610 = vmatprep.subr.mxu0 %v366
    %611 = vmatpush1.msra.mxu0 %v365
    %612 = vmatprep.subr.mxu0 %v373
    %613 = vmatpush1.msra.mxu0 %v372
    %614 = vmatprep.subr.mxu0 %v380
    %615 = vmatpush1.msra.mxu0 %v379
    %616 = vmatprep.subr.mxu0 %v387
    %617 = vmatpush1.msra.mxu0 %v386
    %618 = vmatprep.subr.mxu0 %v394
    %619 = vmatpush1.msra.mxu0 %v393
    %620 = vmatprep.subr.mxu0 %v401
    %621 = vmatpush1.msra.mxu0 %v400
    %622 = vmatprep.subr.mxu0 %v408
    %623 = vmatpush1.msra.mxu0 %v407
    %624 = vmatprep.subr.mxu0 %v415
    %625 = vmatpush1.msra.mxu0 %v414
    %626 = vmatprep.subr.mxu0 %v422
    %627 = vmatpush1.msra.mxu0 %v421
    %628 = vmatprep.subr.mxu0 %v429
    %629 = vmatpush1.msra.mxu0 %v428
    %630 = vmatprep.subr.mxu0 %v436
    %631 = vmatpush1.msra.mxu0 %v435
    %632 = vmatprep.subr.mxu0 %v443
    %633 = vmatpush1.msra.mxu0 %v442
    %634 = vmatprep.subr.mxu0 %v450
    %635 = vmatpush1.msra.mxu0 %v449
    %636 = vmatprep.subr.mxu0 %v457
    %637 = vmatpush1.msra.mxu0 %v456
    %638 = vmatprep.subr.mxu0 %v464
    %639 = vmatpush1.msra.mxu0 %v463
    %640 = vmatprep.mubr.f32.mxu0 %v243
    %641 = vmatmul.mubr.f32.gmra.mrb[0].mxu0 %v242
    %v642 = vpop.f32.mrb[0].mxu0
    %v643 = vadd.f32 %v481, %v642
    %v644 = vpop.f32.mrb[0].mxu0
    %v645 = vadd.f32 %v485, %v644
    %646 = vdwg.mxu0
    %647 = vmatprep.subr.mxu0 %v249
    %648 = vmatpush1.msra.mxu0 %v248
    %649 = vmatprep.subr.mxu0 %v256
    %650 = vmatpush1.msra.mxu0 %v255
    %651 = vmatprep.subr.mxu0 %v263
    %652 = vmatpush1.msra.mxu0 %v262
    %653 = vmatprep.subr.mxu0 %v270
    %654 = vmatpush1.msra.mxu0 %v269
    %655 = vmatprep.subr.mxu0 %v277
    %656 = vmatpush1.msra.mxu0 %v276
    %657 = vmatprep.subr.mxu0 %v284
    %658 = vmatpush1.msra.mxu0 %v283
    %659 = vmatprep.subr.mxu0 %v291
    %660 = vmatpush1.msra.mxu0 %v290
    %661 = vmatprep.subr.mxu0 %v298
    %662 = vmatpush1.msra.mxu0 %v297
    %663 = vmatprep.subr.mxu0 %v305
    %664 = vmatpush1.msra.mxu0 %v304
    %665 = vmatprep.subr.mxu0 %v312
    %666 = vmatpush1.msra.mxu0 %v311
    %667 = vmatprep.subr.mxu0 %v319
    %668 = vmatpush1.msra.mxu0 %v318
    %669 = vmatprep.subr.mxu0 %v326
    %670 = vmatpush1.msra.mxu0 %v325
    %671 = vmatprep.subr.mxu0 %v333
    %672 = vmatpush1.msra.mxu0 %v332
    %673 = vmatprep.subr.mxu0 %v340
    %674 = vmatpush1.msra.mxu0 %v339
    %675 = vmatprep.subr.mxu0 %v347
    %676 = vmatpush1.msra.mxu0 %v346
    %677 = vmatprep.subr.mxu0 %v354
    %678 = vmatpush1.msra.mxu0 %v353
    %679 = vmatprep.subr.mxu0 %v361
    %680 = vmatpush1.msra.mxu0 %v360
    %681 = vmatprep.subr.mxu0 %v368
    %682 = vmatpush1.msra.mxu0 %v367
    %683 = vmatprep.subr.mxu0 %v375
    %684 = vmatpush1.msra.mxu0 %v374
    %685 = vmatprep.subr.mxu0 %v382
    %686 = vmatpush1.msra.mxu0 %v381
    %687 = vmatprep.subr.mxu0 %v389
    %688 = vmatpush1.msra.mxu0 %v388
    %689 = vmatprep.subr.mxu0 %v396
    %690 = vmatpush1.msra.mxu0 %v395
    %691 = vmatprep.subr.mxu0 %v403
    %692 = vmatpush1.msra.mxu0 %v402
    %693 = vmatprep.subr.mxu0 %v410
    %694 = vmatpush1.msra.mxu0 %v409
    %695 = vmatprep.subr.mxu0 %v417
    %696 = vmatpush1.msra.mxu0 %v416
    %697 = vmatprep.subr.mxu0 %v424
    %698 = vmatpush1.msra.mxu0 %v423
    %699 = vmatprep.subr.mxu0 %v431
    %700 = vmatpush1.msra.mxu0 %v430
    %701 = vmatprep.subr.mxu0 %v438
    %702 = vmatpush1.msra.mxu0 %v437
    %703 = vmatprep.subr.mxu0 %v445
    %704 = vmatpush1.msra.mxu0 %v444
    %705 = vmatprep.subr.mxu0 %v452
    %706 = vmatpush1.msra.mxu0 %v451
    %707 = vmatprep.subr.mxu0 %v459
    %708 = vmatpush1.msra.mxu0 %v458
    %709 = vmatprep.subr.mxu0 %v466
    %710 = vmatpush1.msra.mxu0 %v465
    %711 = vmatprep.mubr.f32.mxu0 %v243
    %712 = vmatmul.mubr.f32.gmra.mrb[0].mxu0 %v242
    %v713 = vpop.f32.mrb[0].mxu0
    %v714 = vadd.f32 %v489, %v713
    %v715 = vpop.f32.mrb[0].mxu0
    %v716 = vadd.f32 %v493, %v715
    %717 = vdwg.mxu0
    %718 = vmatprep.subr.mxu0 0.0
    %719 = vmatpush1.msra.mxu0 %v250
    %720 = vmatprep.subr.mxu0 0.0
    %721 = vmatpush1.msra.mxu0 %v257
    %722 = vmatprep.subr.mxu0 0.0
    %723 = vmatpush1.msra.mxu0 %v264
    %724 = vmatprep.subr.mxu0 0.0
    %725 = vmatpush1.msra.mxu0 %v271
    %726 = vmatprep.subr.mxu0 0.0
    %727 = vmatpush1.msra.mxu0 %v278
    %728 = vmatprep.subr.mxu0 0.0
    %729 = vmatpush1.msra.mxu0 %v285
    %730 = vmatprep.subr.mxu0 0.0
    %731 = vmatpush1.msra.mxu0 %v292
    %732 = vmatprep.subr.mxu0 0.0
    %733 = vmatpush1.msra.mxu0 %v299
    %734 = vmatprep.subr.mxu0 0.0
    %735 = vmatpush1.msra.mxu0 %v306
    %736 = vmatprep.subr.mxu0 0.0
    %737 = vmatpush1.msra.mxu0 %v313
    %738 = vmatprep.subr.mxu0 0.0
    %739 = vmatpush1.msra.mxu0 %v320
    %740 = vmatprep.subr.mxu0 0.0
    %741 = vmatpush1.msra.mxu0 %v327
    %742 = vmatprep.subr.mxu0 0.0
    %743 = vmatpush1.msra.mxu0 %v334
    %744 = vmatprep.subr.mxu0 0.0
    %745 = vmatpush1.msra.mxu0 %v341
    %746 = vmatprep.subr.mxu0 0.0
    %747 = vmatpush1.msra.mxu0 %v348
    %748 = vmatprep.subr.mxu0 0.0
    %749 = vmatpush1.msra.mxu0 %v355
    %750 = vmatprep.subr.mxu0 0.0
    %751 = vmatpush1.msra.mxu0 %v362
    %752 = vmatprep.subr.mxu0 0.0
    %753 = vmatpush1.msra.mxu0 %v369
    %754 = vmatprep.subr.mxu0 0.0
    %755 = vmatpush1.msra.mxu0 %v376
    %756 = vmatprep.subr.mxu0 0.0
    %757 = vmatpush1.msra.mxu0 %v383
    %758 = vmatprep.subr.mxu0 0.0
    %759 = vmatpush1.msra.mxu0 %v390
    %760 = vmatprep.subr.mxu0 0.0
    %761 = vmatpush1.msra.mxu0 %v397
    %762 = vmatprep.subr.mxu0 0.0
    %763 = vmatpush1.msra.mxu0 %v404
    %764 = vmatprep.subr.mxu0 0.0
    %765 = vmatpush1.msra.mxu0 %v411
    %766 = vmatprep.subr.mxu0 0.0
    %767 = vmatpush1.msra.mxu0 %v418
    %768 = vmatprep.subr.mxu0 0.0
    %769 = vmatpush1.msra.mxu0 %v425
    %770 = vmatprep.subr.mxu0 0.0
    %771 = vmatpush1.msra.mxu0 %v432
    %772 = vmatprep.subr.mxu0 0.0
    %773 = vmatpush1.msra.mxu0 %v439
    %774 = vmatprep.subr.mxu0 0.0
    %775 = vmatpush1.msra.mxu0 %v446
    %776 = vmatprep.subr.mxu0 0.0
    %777 = vmatpush1.msra.mxu0 %v453
    %778 = vmatprep.subr.mxu0 0.0
    %779 = vmatpush1.msra.mxu0 %v460
    %780 = vmatprep.subr.mxu0 0.0
    %781 = vmatpush1.msra.mxu0 %v467
    %782 = vmatprep.mubr.f32.mxu0 %v243
    %783 = vmatmul.mubr.f32.gmra.mrb[0].mxu0 %v242
    %v784 = vpop.f32.mrb[0].mxu0
    %v785 = vadd.f32 %v497, %v784
    %v786 = vpop.f32.mrb[0].mxu0
    %787 = vdwg.mxu0
    %v788 = vtanh.pop %v572
    %v789 = vtanh.pop %v574
    %v790 = vtanh.pop %v643
    %v791 = vtanh.pop %v645
    %v792 = vtanh.pop %v714
    %v793 = vtanh.pop %v716
    %v794 = vtanh.pop %v785
    %795 = vst [vmem:[#allocation2] sm:$0xff] %v788
    %796 = vst [vmem:[#allocation2 + $0x8] sm:$0xff] %v789
    %797 = vst [vmem:[#allocation2 + $0x10] sm:$0xff] %v790
    %798 = vst [vmem:[#allocation2 + $0x18] sm:$0xff] %v791
    %799 = vst [vmem:[#allocation2 + $0x20] sm:$0xff] %v792
    %800 = vst [vmem:[#allocation2 + $0x28] sm:$0xff] %v793
    %vm801 = vcmask 130048
    %802 = vst.msk [vmem:[#allocation2 + $0x30] sm:$0xff] %vm801, %v794
    // Predicated region
    $region30: #{generator_forward.1} parent=1 // pred_check
      _
    $region31: #{generator_forward.1} parent=1 // pred_check_branch
      %804 = sbr.rel (0) target = $region33
    $region32: #{generator_forward.1} parent=1 // pred_region
      %s806 = ssub.s32 896, 896
      %807 = vsyncadd [#allocation3], %s806
      %s809 = sshll.u32 [#allocation2], 4
      %s810 = int_to_ptr.vmem [resolvable:$true] %s809
      %812 = dma.vmem_to_hbm [thread:$0]  %s810, 896, %s7, [#allocation3]
    $region33: #{generator_forward.1} parent=1 // pred_fallthru
      _
    // Predicated region
    $region34: #{generator_forward.1} parent=1 // pred_check
      _
    $region35: #{generator_forward.1} parent=1 // pred_check_branch
      %814 = sbr.rel (0) target = $region37
    $region36: #{generator_forward.1} parent=1 // pred_region
      %815 = dma.done [#allocation3], 896
    $region37: #{generator_forward.1} parent=1 // pred_fallthru
      _
    %816 = vsyncpa [#allocation3], 1

</llo_original>
